<compile_context>
chip_gen: v5e
topology: v5e:2x2
jax: 0.10.0
libtpu: 0.0.40
codegen_flags: <defaults>
</compile_context>

<pallas_src>
import math

import jax
import jax.numpy as jnp
from jax.experimental import pallas as pl
from jax.experimental.pallas import tpu as pltpu

_LANES = 128
_SUBLANE_ALIGN = 16  # bf16-friendly sublane alignment (also fine for f32)


def _cdiv(a, b):
    return -(-a // b)


def _row_tiling(rows, max_tile_rows=2048):
    """Pick (padded_rows, tile_rows, num_tiles).

    tile_rows is 16-aligned (safe sublane packing for bf16 inputs).  Prefers an
    exact divisor of the 16-aligned row count (no padding); otherwise pads the
    rows up to a multiple of the chosen tile.
    """
    rp = _cdiv(rows, _SUBLANE_ALIGN) * _SUBLANE_ALIGN
    max_tr = (max_tile_rows // _SUBLANE_ALIGN) * _SUBLANE_ALIGN
    if rp <= max_tr:
        return rp, rp, 1
    # Look for a 16-aligned divisor in [max_tr/4, max_tr] so blocks stay big
    # enough (>= ~256 KiB f32) to amortize the per-step pipeline overhead.
    tr = max_tr
    while tr >= max(_SUBLANE_ALIGN, max_tr // 4):
        if rp % tr == 0:
            return rp, tr, rp // tr
        tr -= _SUBLANE_ALIGN
    # No good divisor: pad rows up to a multiple of the max tile.
    tr = max_tr
    rp2 = _cdiv(rp, tr) * tr
    return rp2, tr, rp2 // tr


def _bce_partial_sum_kernel(x_ref, t_ref, o_ref):
    """One (tile_rows, 128) tile of stable BCE-with-logits, partial sums.

    o_ref is an (8, 128) f32 accumulator tile; its BlockSpec index is constant
    over the inner grid axis so it stays resident in VMEM across the reduction
    and is written back to HBM only once per partial.
    """
    @pl.when(pl.program_id(1) == 0)
    def _():
        o_ref[...] = jnp.zeros_like(o_ref)

    x = x_ref[...].astype(jnp.float32)
    t = t_ref[...].astype(jnp.float32)
    # numerically-stable BCE with logits: max(x,0) - x*t + log1p(exp(-|x|))
    loss = jnp.maximum(x, 0.0) - x * t + jnp.log1p(jnp.exp(-jnp.abs(x)))
    # Fold the sublane-aligned row groups onto a single (8, 128) vreg:
    # pure VPU adds; the one cross-lane reduce is deferred to the wrapper.
    o_ref[...] += loss.reshape(-1, 8, _LANES).sum(axis=0)


def _bce_mean_one(pred, gt, max_tile_rows=2048):
    """Mean BCEWithLogits for a single (logits, targets) pair via Pallas."""
    x = jnp.asarray(pred)
    t = jnp.asarray(gt)
    assert x.shape == t.shape, (x.shape, t.shape)
    m_true = math.prod(x.shape)

    # Pass floating dtypes through unchanged (bf16 stays bf16 on the HBM wire,
    # upcast happens inside the kernel); only non-float inputs are promoted.
    if not jnp.issubdtype(x.dtype, jnp.floating):
        x = x.astype(jnp.float32)
    if not jnp.issubdtype(t.dtype, jnp.floating):
        t = t.astype(jnp.float32)

    xf = x.reshape(-1)
    tf = t.reshape(-1)

    rows = _cdiv(m_true, _LANES)
    rows_padded, tile_rows, num_tiles = _row_tiling(rows, max_tile_rows)
    m_padded = rows_padded * _LANES
    if m_padded != m_true:
        pad = m_padded - m_true
        # Loss-neutral pad: x=1000, t=1  ->  1000 - 1000 + log1p(exp(-1000)) == 0
        xf = jnp.concatenate([xf, jnp.full((pad,), 1000.0, dtype=xf.dtype)])
        tf = jnp.concatenate([tf, jnp.full((pad,), 1.0, dtype=tf.dtype)])

    x2 = xf.reshape(rows_padded, _LANES)
    t2 = tf.reshape(rows_padded, _LANES)

    # First ("parallel") axis: split the tiles in two so both v7x TensorCores
    # participate when there is enough work; harmless on v5e/v6e.
    num_partials = 2 if (num_tiles >= 2 and num_tiles % 2 == 0) else 1
    k_tiles = num_tiles // num_partials

    out = pl.pallas_call(
        _bce_partial_sum_kernel,
        out_shape=jax.ShapeDtypeStruct((num_partials * 8, _LANES), jnp.float32),
        grid=(num_partials, k_tiles),
        in_specs=[
            pl.BlockSpec((tile_rows, _LANES), lambda p, k: (p * k_tiles + k, 0)),
            pl.BlockSpec((tile_rows, _LANES), lambda p, k: (p * k_tiles + k, 0)),
        ],
        out_specs=pl.BlockSpec((8, _LANES), lambda p, k: (p, 0)),
        compiler_params=pltpu.CompilerParams(
            dimension_semantics=("parallel", "arbitrary")
        ),
    )(x2, t2)

    # Single small cross-lane reduce + divide by the TRUE element count.
    return jnp.sum(out) * (1.0 / float(m_true))


def concat_bce_with_logits_loss(dic_tmp, y, step=0, *, max_tile_rows=2048):
    """JAX/Pallas equivalent of Concat_BCEWithLogitsLoss.forward
    (top_k_percent_pixels=None). Returns a 1-D array of shape (len(dic_tmp),)
    where entry i is mean BCEWithLogits(dic_tmp[i], y[i])."""
    del step  # only used by the (unimplemented) hard-example-mining branch
    losses = [_bce_mean_one(p, g, max_tile_rows) for p, g in zip(dic_tmp, y)]
    return jnp.stack(losses)


def _reference(dic_tmp, y):
    """Pure-JAX reference (mirrors nn.BCEWithLogitsLoss(reduction='mean'))."""
    losses = []
    for p, g in zip(dic_tmp, y):
        p = jnp.asarray(p, jnp.float32)
        g = jnp.asarray(g, jnp.float32)
        l = jnp.maximum(p, 0.0) - p * g + jnp.log1p(jnp.exp(-jnp.abs(p)))
        losses.append(jnp.mean(l))
    return jnp.stack(losses)


if __name__ == "__main__":
    key = jax.random.PRNGKey(0)
    # Multi-scale list of PyTorch-style NCHW logits; last item has a different
    # (and non-16-row-aligned after flattening) shape to exercise the padded /
    # per-item path.
    shapes = [(2, 4, 16, 16), (2, 4, 16, 16), (2, 4, 8, 8)]
    n_items = len(shapes)
    keys = jax.random.split(key, 2 * n_items)
    dic_tmp = [jax.random.normal(keys[i], shapes[i], dtype=jnp.float32)
               for i in range(n_items)]
    # Targets are 0/1 masks -> bf16 is exact and halves that HBM stream.
    y = [(jax.random.uniform(keys[n_items + i], shapes[i]) > 0.5
          ).astype(jnp.bfloat16) for i in range(n_items)]

    out = concat_bce_with_logits_loss(dic_tmp, y, step=0)
    out = jax.block_until_ready(out)

    ref = _reference(dic_tmp, y)
    assert out.shape == (n_items,)
    assert jnp.allclose(out, ref, rtol=1e-5, atol=1e-5), (out, ref)
    print("KERNEL_OK")
</pallas_src>

<mosaic_0001>
module attributes {stable_mosaic.version = 11 : i64} {
  func.func @_bce_partial_sum_kernel(%arg0: i32, %arg1: i32, %arg2: memref<16x128xf32, #tpu.memory_space<vmem>>, %arg3: memref<16x128xbf16, #tpu.memory_space<vmem>>, %arg4: memref<8x128xf32, #tpu.memory_space<vmem>>) attributes {dimension_semantics = [#tpu.dimension_semantics<parallel>, #tpu.dimension_semantics<arbitrary>], iteration_bounds = array<i64: 1, 1>, scalar_prefetch = 0 : i64, scratch_operands = 0 : i64, tpu.core_type = #tpu.core_type<tc>, window_params = [{transform_indices = @transform_0, window_bounds = array<i64: 16, 128>}, {transform_indices = @transform_1, window_bounds = array<i64: 16, 128>}, {transform_indices = @transform_2, window_bounds = array<i64: 8, 128>}]} {
    %c0_i32 = arith.constant 0 : i32
    %0 = arith.cmpi eq, %arg1, %c0_i32 : i32
    %1 = arith.extui %0 : i1 to i32
    %c0_i32_0 = arith.constant 0 : i32
    %2 = arith.cmpi ne, %1, %c0_i32_0 : i32
    scf.if %2 {
      %cst_10 = arith.constant 0.000000e+00 : f32
      %21 = vector.broadcast %cst_10 : f32 to vector<8x128xf32>
      %c0_11 = arith.constant 0 : index
      %c0_12 = arith.constant 0 : index
      %22 = vector.load %arg4[%c0_11, %c0_12] : memref<8x128xf32, #tpu.memory_space<vmem>>, vector<8x128xf32>
      tpu.vector_store %arg4[%c0_11, %c0_12], %21 {strides = array<i32>} : memref<8x128xf32, #tpu.memory_space<vmem>>, vector<8x128xf32>,
    } else {
    }
    %c0 = arith.constant 0 : index
    %c0_1 = arith.constant 0 : index
    %3 = vector.load %arg2[%c0, %c0_1] : memref<16x128xf32, #tpu.memory_space<vmem>>, vector<16x128xf32>
    %c0_2 = arith.constant 0 : index
    %c0_3 = arith.constant 0 : index
    %4 = vector.load %arg3[%c0_2, %c0_3] : memref<16x128xbf16, #tpu.memory_space<vmem>>, vector<16x128xbf16>
    %5 = arith.extf %4 : vector<16x128xbf16> to vector<16x128xf32>
    %cst = arith.constant 0.000000e+00 : f32
    %6 = vector.broadcast %cst : f32 to vector<16x128xf32>
    %7 = arith.maximumf %3, %6 : vector<16x128xf32>
    %8 = arith.mulf %3, %5 : vector<16x128xf32>
    %9 = arith.subf %7, %8 : vector<16x128xf32>
    %10 = math.absf %3 : vector<16x128xf32>
    %cst_4 = arith.constant 0.000000e+00 : f32
    %11 = vector.broadcast %cst_4 : f32 to vector<16x128xf32>
    %12 = arith.subf %11, %10 : vector<16x128xf32>
    %13 = math.exp %12 : vector<16x128xf32>
    %14 = math.log1p %13 : vector<16x128xf32>
    %15 = arith.addf %9, %14 : vector<16x128xf32>
    %c0_5 = arith.constant 0 : index
    %c0_6 = arith.constant 0 : index
    %16 = vector.load %arg4[%c0_5, %c0_6] : memref<8x128xf32, #tpu.memory_space<vmem>>, vector<8x128xf32>
    %17 = vector.shape_cast %15 : vector<16x128xf32> to vector<2x8x128xf32>
    %cst_7 = arith.constant dense<0.000000e+00> : vector<8x128xf32>
    %18 = vector.multi_reduction <add>, %17, %cst_7 [0] : vector<2x8x128xf32> to vector<8x128xf32>
    %19 = arith.addf %16, %18 : vector<8x128xf32>
    %c0_8 = arith.constant 0 : index
    %c0_9 = arith.constant 0 : index
    %20 = vector.load %arg4[%c0_8, %c0_9] : memref<8x128xf32, #tpu.memory_space<vmem>>, vector<8x128xf32>
    tpu.vector_store %arg4[%c0_8, %c0_9], %19 {strides = array<i32>} : memref<8x128xf32, #tpu.memory_space<vmem>>, vector<8x128xf32>,
    return
  }
  func.func @transform_0(%arg0: i32, %arg1: i32) -> (i32, i32) {
    %c1_i32 = arith.constant 1 : i32
    %0 = arith.muli %arg0, %c1_i32 : i32
    %1 = arith.addi %0, %arg1 : i32
    %c0_i32 = arith.constant 0 : i32
    %c0_i32_0 = arith.constant 0 : i32
    return %1, %c0_i32 : i32, i32
  }
  func.func @transform_1(%arg0: i32, %arg1: i32) -> (i32, i32) {
    %c1_i32 = arith.constant 1 : i32
    %0 = arith.muli %arg0, %c1_i32 : i32
    %1 = arith.addi %0, %arg1 : i32
    %c0_i32 = arith.constant 0 : i32
    %c0_i32_0 = arith.constant 0 : i32
    return %1, %c0_i32 : i32, i32
  }
  func.func @transform_2(%arg0: i32, %arg1: i32) -> (i32, i32) {
    %c0_i32 = arith.constant 0 : i32
    %c0_i32_0 = arith.constant 0 : i32
    return %arg0, %c0_i32 : i32, i32
  }
}

</mosaic_0001>

<llo_original>
// kernel: tpu_custom_call.1
$region0: #{tpu_custom_call.1}
  #allocation0 [shape = 'u32[]', space=smem, size = 0x4, offset = 0x4, fixed_abs, tag = 'smem constant byte address 0x4 - core index']
  #allocation1 [shape = 'u32[72,128]{1,0:T(1,128)}', space=vmem, size = 0x9000, scoped, tag = 'internal scratch']
  %s0 = inlined_call_operand.hbm [shape: f32[16,128], index: 0, kind: input, shape index: {}]
  %s1 = inlined_call_operand.hbm [shape: bf16[16,128], index: 1, kind: input, shape index: {}]
  %s2 = inlined_call_operand.hbm [shape: f32[8,128], index: 2, kind: output, shape index: {}]
  %s3 = sld [smem:[#allocation0]]
  $region30: #{tpu_custom_call.1} parent=0
    _
  %s5 = ssub.s32 1, %s3
  %s6 = scalar_select 0, %s5, %s3
  $region1: #{tpu_custom_call.1} parent=0
    #allocation2 [shape = 'u8[8192]{0}', space=vmem, size = 0x2000, scoped, tag = 'input window, operand 0, single buffered']
    #allocation3 [shape = 's32[1]{0}', space=sflag, size = 0x4, scoped, tag = 'scoped memory for tpu_custom_call.1']
    #allocation4 [shape = 's32[1]{0}', space=sflag, size = 0x4, scoped, tag = 'scoped memory for tpu_custom_call.1']
    #allocation5 [shape = 'u8[4096]{0}', space=vmem, size = 0x1000, scoped, tag = 'input window, operand 1, single buffered']
    #allocation6 [shape = 's32[1]{0}', space=sflag, size = 0x4, scoped, tag = 'scoped memory for tpu_custom_call.1']
    #allocation7 [shape = 'u8[4096]{0}', space=vmem, size = 0x1000, scoped, tag = 'output window, operand 0, single buffered']
    %7 = vsyncpa [#allocation3], 0
    %8 = vsyncpa [#allocation6], 0
    %9 = vsyncpa [#allocation4], 0
    // Predicated region
    $region2: #{tpu_custom_call.1} parent=1 // pred_check
      _
    $region3: #{tpu_custom_call.1} parent=1 // pred_check_branch
      %11 = sbr.rel (0) target = $region5
    $region4: #{tpu_custom_call.1} parent=1 // pred_region
      %s12 = sadd.s32 0, 0
      %s13 = smul.u32 2, %s12
      %15 = vsyncadd [#allocation3], 0
      %s16 = smul.addr %s13, 8
      %s17 = scalar_lea.hbm %s0, %s16
      %s18 = sshll.u32 %s17, 4
      %s19 = int_to_ptr.hbm [resolvable:$true] %s18
      %s20 = sshll.u32 [#allocation2], 4
      %s21 = int_to_ptr.vmem [resolvable:$true] %s20
      %26 = dma.hbm_to_vmem [thread:$0]  %s19, 256, %s21, [#allocation3], 128, 128, 8
    $region5: #{tpu_custom_call.1} parent=1 // pred_fallthru
      _
    // Predicated region
    $region6: #{tpu_custom_call.1} parent=1 // pred_check
      _
    $region7: #{tpu_custom_call.1} parent=1 // pred_check_branch
      %28 = sbr.rel (0) target = $region9
    $region8: #{tpu_custom_call.1} parent=1 // pred_region
      %s29 = sadd.s32 0, 0
      %s30 = smul.u32 2, %s29
      %32 = vsyncadd [#allocation6], 0
      %s33 = smul.addr %s30, 4
      %s34 = scalar_lea.hbm %s1, %s33
      %s35 = sshll.u32 %s34, 4
      %s36 = int_to_ptr.hbm [resolvable:$true] %s35
      %s37 = sshll.u32 [#allocation5], 4
      %s38 = int_to_ptr.vmem [resolvable:$true] %s37
      %43 = dma.hbm_to_vmem [thread:$0]  %s36, 128, %s38, [#allocation6], 64, 64, 4
    $region9: #{tpu_custom_call.1} parent=1 // pred_fallthru
      _
    // Predicated region
    $region10: #{tpu_custom_call.1} parent=1 // pred_check
      _
    $region11: #{tpu_custom_call.1} parent=1 // pred_check_branch
      %45 = sbr.rel (0) target = $region13
    $region12: #{tpu_custom_call.1} parent=1 // pred_region
      %47 = dma.done [#allocation3], 256
    $region13: #{tpu_custom_call.1} parent=1 // pred_fallthru
      _
    // Predicated region
    $region14: #{tpu_custom_call.1} parent=1 // pred_check
      _
    $region15: #{tpu_custom_call.1} parent=1 // pred_check_branch
      %49 = sbr.rel (0) target = $region17
    $region16: #{tpu_custom_call.1} parent=1 // pred_region
      %51 = dma.done [#allocation6], 128
    $region17: #{tpu_custom_call.1} parent=1 // pred_fallthru
      _
    %s52 = sadd.s32 0, 0
    %s53 = smul.u32 2, %s52
    %s54 = sadd.s32 0, 0
    %s55 = smul.u32 2, %s54
    %p56 = scmp.eq.s32.totalorder 0, 0
    // Predicated region
    $region18: #{tpu_custom_call.1} parent=1 // pred_check
      %p57 = pneg %p56
    $region19: #{tpu_custom_call.1} parent=1 // pred_check_branch
      %59 = sbr.rel (%p57) target = $region21
    $region20: #{tpu_custom_call.1} parent=1 // pred_region
      %60 = vst [vmem:[#allocation7] sm:$0xff] 0.0
    $region21: #{tpu_custom_call.1} parent=1 // pred_fallthru
      _
    %v61 = vld [vmem:[#allocation2] sm:$0xff]
    %v62 = vld [vmem:[#allocation2 + $0x8] sm:$0xff]
    %v63 = vld [vmem:[#allocation5] sm:$0xf]
    %v64 = vld [vmem:[#allocation5 + $0x4] sm:$0xf]
    %v65 = vunpack.c.l.bf16 %v63
    %v66 = vunpack.c.l.bf16 %v64
    %v67 = vmax.f32 %v61, 0.0
    %v68 = vmax.f32 %v62, 0.0
    %v69 = vmul.f32 %v61, %v65
    %v70 = vmul.f32 %v62, %v66
    %v71 = vsub.f32 %v67, %v69
    %v72 = vsub.f32 %v68, %v70
    %v73 = vand.u32 2147483647, %v61
    %v74 = vand.u32 2147483647, %v62
    %v75 = vsub.f32 0.0, %v73
    %v76 = vsub.f32 0.0, %v74
    %v77 = vmul.f32 %v75, 1.442695
    %v78 = vpow.pop %v77
    %v79 = vmul.f32 %v76, 1.442695
    %v80 = vpow.pop %v79
    %v81 = vadd.f32 %v78, 1.0
    %v82 = vlog2.pop %v81
    %v83 = vmul.f32 %v82, 0.6931472
    %v84 = vmul.f32 -0.5, %v78
    %v85 = vadd.f32 %v84, 1.0
    %v86 = vmul.f32 %v85, %v78
    %v87 = vand.u32 2147483647, %v78
    %vm88 = vcmp.lt.f32.partialorder %v87, 0.0004427343
    %v89 = vsel %vm88, %v86, %v83
    %v90 = vadd.f32 %v80, 1.0
    %v91 = vlog2.pop %v90
    %v92 = vmul.f32 %v91, 0.6931472
    %v93 = vmul.f32 -0.5, %v80
    %v94 = vadd.f32 %v93, 1.0
    %v95 = vmul.f32 %v94, %v80
    %v96 = vand.u32 2147483647, %v80
    %vm97 = vcmp.lt.f32.partialorder %v96, 0.0004427343
    %v98 = vsel %vm97, %v95, %v92
    %v99 = vadd.f32 %v71, %v89
    %v100 = vadd.f32 %v72, %v98
    %v101 = vld [vmem:[#allocation7] sm:$0xff]
    %v102 = vadd.f32 %v99, %v100
    %v103 = vadd.f32 %v101, %v102
    %104 = vst [vmem:[#allocation7] sm:$0xff] %v103
    // Predicated region
    $region22: #{tpu_custom_call.1} parent=1 // pred_check
      _
    $region23: #{tpu_custom_call.1} parent=1 // pred_check_branch
      %106 = sbr.rel (0) target = $region25
    $region24: #{tpu_custom_call.1} parent=1 // pred_region
      %108 = vsyncadd [#allocation4], 0
      %s110 = sshll.u32 [#allocation7], 4
      %s111 = int_to_ptr.vmem [resolvable:$true] %s110
      %s112 = sshll.u32 %s2, 4
      %s113 = int_to_ptr.hbm [resolvable:$true] %s112
      %115 = dma.vmem_to_hbm [thread:$0]  %s111, 128, %s113, [#allocation4]
    $region25: #{tpu_custom_call.1} parent=1 // pred_fallthru
      _
    // Predicated region
    $region26: #{tpu_custom_call.1} parent=1 // pred_check
      _
    $region27: #{tpu_custom_call.1} parent=1 // pred_check_branch
      %117 = sbr.rel (0) target = $region29
    $region28: #{tpu_custom_call.1} parent=1 // pred_region
      %119 = dma.done [#allocation4], 128
    $region29: #{tpu_custom_call.1} parent=1 // pred_fallthru
      _
    %120 = vsyncpa [#allocation3], 1
    %121 = vsyncpa [#allocation6], 1
    %122 = vsyncpa [#allocation4], 1

</llo_original>
